<compile_context>
chip_gen: v5e
topology: v5e:2x2
jax: 0.10.0
libtpu: 0.0.40
codegen_flags: <defaults>
</compile_context>

<pallas_src>
import functools
import math

import jax
import jax.numpy as jnp
from jax.experimental import pallas as pl
from jax.experimental.pallas import tpu as pltpu


def _mhca_kernel(x_ref, wq_ref, wk_ref, wv_ref, bq_ref, bk_ref, bv_ref,
                 wfc_ref, bfc_ref, gamma_ref, beta_ref, o_ref,
                 *, n_head, d_x, block_b, seq_len, eps=1e-6):
    hdx = n_head * d_x

    x = x_ref[...]                               # (Bt*L, D) in compute dtype
    xf = x.astype(jnp.float32)                   # residual / LayerNorm path

    # ---- QKV projections over ALL Bt*L rows (native-dtype MXU, f32 accum) ----
    q = jnp.dot(x, wq_ref[...], preferred_element_type=jnp.float32) + bq_ref[...]
    k = jnp.dot(x, wk_ref[...], preferred_element_type=jnp.float32) + bk_ref[...]
    v = jnp.dot(x, wv_ref[...], preferred_element_type=jnp.float32) + bv_ref[...]

    # Per-head softmax over the channel axis == a single softmax over the full
    # H*dx axis with cross-head scores masked to -inf (block-diagonal mask).
    # Built once per step (hoisted out of the batch loop); skipped for H == 1.
    if n_head > 1:
        c_row = jax.lax.broadcasted_iota(jnp.int32, (hdx, hdx), 0) // d_x
        c_col = jax.lax.broadcasted_iota(jnp.int32, (hdx, hdx), 1) // d_x
        neg_mask = jnp.where(c_row == c_col, 0.0, -1e30).astype(jnp.float32)
    scale = 1.0 / math.sqrt(d_x)

    # ---- channel attention: small static loop over the Bt batch elements ----
    outs = []
    for b in range(block_b):
        r0 = b * seq_len
        qb = q[r0:r0 + seq_len, :]               # (L, H*dx) f32
        kb = k[r0:r0 + seq_len, :]
        vb = v[r0:r0 + seq_len, :]

        # scores[c1, c2] = sum_l q[l, c1] * k[l, c2]; the lhs transpose is
        # folded into the MXU op via dimension_numbers (no XLU transpose).
        s = jax.lax.dot_general(qb, kb, (((0,), (0,)), ((), ())),
                                preferred_element_type=jnp.float32) * scale
        if n_head > 1:
            s = s + neg_mask
        s = s - jnp.max(s, axis=-1, keepdims=True)
        p = jnp.exp(s)
        attn = p * pl.reciprocal(jnp.sum(p, axis=-1, keepdims=True), approx=True)
        # TODO(synk): optional graph mixing (adj @ attn @ adj^T) not implemented;
        # this kernel covers the adj=None forward path.  Dropout is identity in
        # eval/inference mode.
        outs.append(jnp.dot(vb, attn, preferred_element_type=jnp.float32))

    out = outs[0] if block_b == 1 else jnp.concatenate(outs, axis=0)  # (Bt*L, H*dx)

    # ---- output projection + residual + LayerNorm over ALL Bt*L rows ----
    y = jnp.dot(out.astype(wfc_ref.dtype), wfc_ref[...],
                preferred_element_type=jnp.float32)
    y = y + bfc_ref[...] + xf

    mean = jnp.mean(y, axis=-1, keepdims=True)
    c = y - mean
    var = jnp.mean(c * c, axis=-1, keepdims=True)
    y = c * jax.lax.rsqrt(var + eps)
    y = y * gamma_ref[...] + beta_ref[...]

    o_ref[...] = y.astype(o_ref.dtype)


def _pick_block_b(B, L, target_rows=256):
    """Pick Bt (batch elems per grid step): fill ~256 MXU rows, keep the block
    sublane-aligned, and prefer a grid length >= 2 (both v7x TensorCores)."""
    divisors = [d for d in range(1, B + 1) if B % d == 0]
    ok = [d for d in divisors
          if (d * L) % 8 == 0 and d * L <= max(target_rows, L)]
    if not ok:
        return B                      # single full-array block (shape-exempt)
    bt = max(ok)
    two_core = [d for d in ok if B // d >= 2]
    if B // bt < 2 and two_core:
        bt = max(two_core)
    return bt


def multihead_channel_attention(x, w_qkv, b_qkv, w_fc, b_fc, gamma, beta, *,
                                n_head, d_x, compute_dtype=jnp.bfloat16,
                                block_b=None):
    """Fused MultiheadChannelAttention forward (adj=None, eval mode).

    x:      [B, L, D]
    w_qkv:  [D, 3*n_head*d_x]   b_qkv: [3*n_head*d_x]    (math layout, x @ W)
    w_fc:   [n_head*d_x, D]     b_fc:  [D]
    gamma, beta: [D]            (LayerNorm affine params)
    compute_dtype: dtype fed to the MXU for x and the big weights (bf16 default).
    """
    B, L, D = x.shape
    hdx = n_head * d_x
    assert w_qkv.shape == (D, 3 * hdx)
    assert w_fc.shape == (hdx, D)

    if block_b is None:
        block_b = _pick_block_b(B, L)
    assert B % block_b == 0, (B, block_b)
    rows = block_b * L
    grid = (B // block_b,)

    # Pre-split the fused QKV weights/biases -> no activation lane slicing.
    w_q = w_qkv[:, 0 * hdx:1 * hdx].astype(compute_dtype)
    w_k = w_qkv[:, 1 * hdx:2 * hdx].astype(compute_dtype)
    w_v = w_qkv[:, 2 * hdx:3 * hdx].astype(compute_dtype)
    b_q = b_qkv[0 * hdx:1 * hdx].reshape(1, hdx).astype(jnp.float32)
    b_k = b_qkv[1 * hdx:2 * hdx].reshape(1, hdx).astype(jnp.float32)
    b_v = b_qkv[2 * hdx:3 * hdx].reshape(1, hdx).astype(jnp.float32)
    w_fc_c = w_fc.astype(compute_dtype)
    b_fc2 = b_fc.reshape(1, D).astype(jnp.float32)
    gamma2 = gamma.reshape(1, D).astype(jnp.float32)
    beta2 = beta.reshape(1, D).astype(jnp.float32)

    # Present x / out as 2-D row slabs; (B, L, D) -> (B*L, D) is a free
    # leading-dim reshape, and each block holds Bt whole batch elements.
    x2 = x.reshape(B * L, D).astype(compute_dtype)

    kernel = functools.partial(_mhca_kernel, n_head=n_head, d_x=d_x,
                               block_b=block_b, seq_len=L)

    def resident(shape):
        return pl.BlockSpec(shape, lambda i: (0, 0))   # VMEM-resident across grid

    out2 = pl.pallas_call(
        kernel,
        out_shape=jax.ShapeDtypeStruct((B * L, D), x.dtype),
        grid_spec=pltpu.PrefetchScalarGridSpec(
            num_scalar_prefetch=0,
            grid=grid,
            in_specs=[
                pl.BlockSpec((rows, D), lambda i: (i, 0)),   # x rows (Bt*L, D)
                resident((D, hdx)),      # w_q
                resident((D, hdx)),      # w_k
                resident((D, hdx)),      # w_v
                resident((1, hdx)),      # b_q
                resident((1, hdx)),      # b_k
                resident((1, hdx)),      # b_v
                resident((hdx, D)),      # w_fc
                resident((1, D)),        # b_fc
                resident((1, D)),        # gamma
                resident((1, D)),        # beta
            ],
            out_specs=pl.BlockSpec((rows, D), lambda i: (i, 0)),
        ),
        compiler_params=pltpu.CompilerParams(
            dimension_semantics=("parallel",),
            # Explicit budget (safe on v5e/v6e's 128 MiB and v7x's 64 MiB VMEM).
            vmem_limit_bytes=32 * 1024 * 1024,
        ),
    )(x2, w_q, w_k, w_v, b_q, b_k, b_v, w_fc_c, b_fc2, gamma2, beta2)

    return out2.reshape(B, L, D)


def _reference_mhca(x, w_qkv, b_qkv, w_fc, b_fc, gamma, beta, *, n_head, d_x,
                    eps=1e-6):
    """Pure-JAX reference mirroring the PyTorch module (adj=None, eval)."""
    B, L, D = x.shape
    hdx = n_head * d_x
    hi = jax.lax.Precision.HIGHEST
    qkv = jnp.einsum("bld,de->ble", x, w_qkv, precision=hi) + b_qkv
    q, k, v = jnp.split(qkv, 3, axis=-1)
    q = q.reshape(B, L, n_head, d_x).transpose(0, 2, 1, 3)   # (B,H,L,dx)
    k = k.reshape(B, L, n_head, d_x).transpose(0, 2, 1, 3)
    v = v.reshape(B, L, n_head, d_x).transpose(0, 2, 1, 3)
    scores = jnp.einsum("bhlc,bhld->bhcd", q, k, precision=hi) / math.sqrt(d_x)
    attn = jax.nn.softmax(scores, axis=-1)
    out = jnp.einsum("bhlc,bhcd->bhld", v, attn, precision=hi)
    out = out.transpose(0, 2, 1, 3).reshape(B, L, hdx)
    y = jnp.einsum("blc,cd->bld", out, w_fc, precision=hi) + b_fc
    y = y + x
    mean = y.mean(-1, keepdims=True)
    var = ((y - mean) ** 2).mean(-1, keepdims=True)
    y = (y - mean) / jnp.sqrt(var + eps)
    return y * gamma + beta


def _run_case(B, L, d_model, n_head, d_x, key, compute_dtype, tol):
    ks = jax.random.split(key, 7)
    hdx = n_head * d_x
    x = jax.random.normal(ks[0], (B, L, d_model), jnp.float32)
    w_qkv = 0.1 * jax.random.normal(ks[1], (d_model, 3 * hdx), jnp.float32)
    b_qkv = 0.1 * jax.random.normal(ks[2], (3 * hdx,), jnp.float32)
    w_fc = 0.1 * jax.random.normal(ks[3], (hdx, d_model), jnp.float32)
    b_fc = 0.1 * jax.random.normal(ks[4], (d_model,), jnp.float32)
    gamma = 1.0 + 0.1 * jax.random.normal(ks[5], (d_model,), jnp.float32)
    beta = 0.1 * jax.random.normal(ks[6], (d_model,), jnp.float32)

    out = multihead_channel_attention(
        x, w_qkv, b_qkv, w_fc, b_fc, gamma, beta,
        n_head=n_head, d_x=d_x, compute_dtype=compute_dtype)
    out = jax.block_until_ready(out)
    assert out.shape == (B, L, d_model)

    # Reference sees the same storage-precision inputs the kernel consumed
    # (isolates kernel error from deliberate bf16 input quantization).
    xq = x.astype(compute_dtype).astype(jnp.float32)
    wqkv_q = w_qkv.astype(compute_dtype).astype(jnp.float32)
    wfc_q = w_fc.astype(compute_dtype).astype(jnp.float32)
    ref = _reference_mhca(xq, wqkv_q, b_qkv, wfc_q, b_fc, gamma, beta,
                          n_head=n_head, d_x=d_x)
    err = float(jnp.max(jnp.abs(out.astype(jnp.float32) - ref)))
    assert err < tol, f"mismatch vs reference: max abs err={err} (tol={tol})"


if __name__ == "__main__":
    key = jax.random.PRNGKey(0)
    k1, k2, k3 = jax.random.split(key, 3)
    # Module defaults (n_head=1, d_x=64) at small shapes, bf16 MXU operands.
    _run_case(B=2, L=8, d_model=32, n_head=1, d_x=64, key=k1,
              compute_dtype=jnp.bfloat16, tol=2e-2)
    # Multi-head path (block-diagonal-masked channel attention).
    _run_case(B=2, L=8, d_model=32, n_head=2, d_x=16, key=k2,
              compute_dtype=jnp.bfloat16, tol=2e-2)
    # Full-f32 path exercising Bt>1 batching (Bt=4 -> 32 rows/step, grid of 2).
    _run_case(B=8, L=8, d_model=32, n_head=1, d_x=32, key=k3,
              compute_dtype=jnp.float32, tol=5e-3)
    print("KERNEL_OK")
</pallas_src>

<mosaic_0001>
module attributes {stable_mosaic.version = 11 : i64} {
  func.func @_mhca_kernel(%arg0: i32, %arg1: memref<8x32xbf16, #tpu.memory_space<vmem>>, %arg2: memref<32x64xbf16, #tpu.memory_space<vmem>>, %arg3: memref<32x64xbf16, #tpu.memory_space<vmem>>, %arg4: memref<32x64xbf16, #tpu.memory_space<vmem>>, %arg5: memref<1x64xf32, #tpu.memory_space<vmem>>, %arg6: memref<1x64xf32, #tpu.memory_space<vmem>>, %arg7: memref<1x64xf32, #tpu.memory_space<vmem>>, %arg8: memref<64x32xbf16, #tpu.memory_space<vmem>>, %arg9: memref<1x32xf32, #tpu.memory_space<vmem>>, %arg10: memref<1x32xf32, #tpu.memory_space<vmem>>, %arg11: memref<1x32xf32, #tpu.memory_space<vmem>>, %arg12: memref<8x32xf32, #tpu.memory_space<vmem>>) attributes {dimension_semantics = [#tpu.dimension_semantics<parallel>], iteration_bounds = array<i64: 2>, scalar_prefetch = 0 : i64, scratch_operands = 0 : i64, tpu.core_type = #tpu.core_type<tc>, window_params = [{transform_indices = @transform_0, window_bounds = array<i64: 8, 32>}, {pipeline_mode = #tpu.pipeline_mode<synchronous>, transform_indices = @transform_1, window_bounds = array<i64: 32, 64>}, {pipeline_mode = #tpu.pipeline_mode<synchronous>, transform_indices = @transform_2, window_bounds = array<i64: 32, 64>}, {pipeline_mode = #tpu.pipeline_mode<synchronous>, transform_indices = @transform_3, window_bounds = array<i64: 32, 64>}, {pipeline_mode = #tpu.pipeline_mode<synchronous>, transform_indices = @transform_4, window_bounds = array<i64: 1, 64>}, {pipeline_mode = #tpu.pipeline_mode<synchronous>, transform_indices = @transform_5, window_bounds = array<i64: 1, 64>}, {pipeline_mode = #tpu.pipeline_mode<synchronous>, transform_indices = @transform_6, window_bounds = array<i64: 1, 64>}, {pipeline_mode = #tpu.pipeline_mode<synchronous>, transform_indices = @transform_7, window_bounds = array<i64: 64, 32>}, {pipeline_mode = #tpu.pipeline_mode<synchronous>, transform_indices = @transform_8, window_bounds = array<i64: 1, 32>}, {pipeline_mode = #tpu.pipeline_mode<synchronous>, transform_indices = @transform_9, window_bounds = array<i64: 1, 32>}, {pipeline_mode = #tpu.pipeline_mode<synchronous>, transform_indices = @transform_10, window_bounds = array<i64: 1, 32>}, {transform_indices = @transform_11, window_bounds = array<i64: 8, 32>}]} {
    %c0 = arith.constant 0 : index
    %c0_0 = arith.constant 0 : index
    %0 = vector.load %arg1[%c0, %c0_0] : memref<8x32xbf16, #tpu.memory_space<vmem>>, vector<8x32xbf16>
    %1 = arith.extf %0 : vector<8x32xbf16> to vector<8x32xf32>
    %c0_1 = arith.constant 0 : index
    %c0_2 = arith.constant 0 : index
    %2 = vector.load %arg2[%c0_1, %c0_2] : memref<32x64xbf16, #tpu.memory_space<vmem>>, vector<32x64xbf16>
    %cst = arith.constant dense<0.000000e+00> : vector<8x64xf32>
    %3 = tpu.matmul %0, %2, %cst {dimension_numbers = #tpu.dot_dimension_numbers<[1], [0], [0], [1], [0, 0, 1, 1], [], []>} : vector<8x32xbf16>, vector<32x64xbf16>, vector<8x64xf32> -> vector<8x64xf32>
    %c0_3 = arith.constant 0 : index
    %c0_4 = arith.constant 0 : index
    %4 = vector.load %arg5[%c0_3, %c0_4] : memref<1x64xf32, #tpu.memory_space<vmem>>, vector<1x64xf32>
    %5 = vector.broadcast %4 : vector<1x64xf32> to vector<8x64xf32>
    %6 = arith.addf %3, %5 : vector<8x64xf32>
    %c0_5 = arith.constant 0 : index
    %c0_6 = arith.constant 0 : index
    %7 = vector.load %arg3[%c0_5, %c0_6] : memref<32x64xbf16, #tpu.memory_space<vmem>>, vector<32x64xbf16>
    %cst_7 = arith.constant dense<0.000000e+00> : vector<8x64xf32>
    %8 = tpu.matmul %0, %7, %cst_7 {dimension_numbers = #tpu.dot_dimension_numbers<[1], [0], [0], [1], [0, 0, 1, 1], [], []>} : vector<8x32xbf16>, vector<32x64xbf16>, vector<8x64xf32> -> vector<8x64xf32>
    %c0_8 = arith.constant 0 : index
    %c0_9 = arith.constant 0 : index
    %9 = vector.load %arg6[%c0_8, %c0_9] : memref<1x64xf32, #tpu.memory_space<vmem>>, vector<1x64xf32>
    %10 = vector.broadcast %9 : vector<1x64xf32> to vector<8x64xf32>
    %11 = arith.addf %8, %10 : vector<8x64xf32>
    %c0_10 = arith.constant 0 : index
    %c0_11 = arith.constant 0 : index
    %12 = vector.load %arg4[%c0_10, %c0_11] : memref<32x64xbf16, #tpu.memory_space<vmem>>, vector<32x64xbf16>
    %cst_12 = arith.constant dense<0.000000e+00> : vector<8x64xf32>
    %13 = tpu.matmul %0, %12, %cst_12 {dimension_numbers = #tpu.dot_dimension_numbers<[1], [0], [0], [1], [0, 0, 1, 1], [], []>} : vector<8x32xbf16>, vector<32x64xbf16>, vector<8x64xf32> -> vector<8x64xf32>
    %c0_13 = arith.constant 0 : index
    %c0_14 = arith.constant 0 : index
    %14 = vector.load %arg7[%c0_13, %c0_14] : memref<1x64xf32, #tpu.memory_space<vmem>>, vector<1x64xf32>
    %15 = vector.broadcast %14 : vector<1x64xf32> to vector<8x64xf32>
    %16 = arith.addf %13, %15 : vector<8x64xf32>
    %cst_15 = arith.constant dense<0.000000e+00> : vector<64x64xf32>
    %17 = tpu.matmul %6, %11, %cst_15 {dimension_numbers = #tpu.dot_dimension_numbers<[0], [0], [1], [1], [0, 1, 1, 1], [], []>} : vector<8x64xf32>, vector<8x64xf32>, vector<64x64xf32> -> vector<64x64xf32>
    %cst_16 = arith.constant 1.250000e-01 : f32
    %18 = vector.broadcast %cst_16 : f32 to vector<64x64xf32>
    %19 = arith.mulf %17, %18 : vector<64x64xf32>
    %cst_17 = arith.constant dense<0xFF800000> : vector<64xf32>
    %20 = vector.multi_reduction <maximumf>, %19, %cst_17 [1] : vector<64x64xf32> to vector<64xf32>
    %21 = vector.shape_cast %20 : vector<64xf32> to vector<64x1xf32>
    %22 = vector.broadcast %21 : vector<64x1xf32> to vector<64x64xf32>
    %23 = arith.subf %19, %22 : vector<64x64xf32>
    %24 = math.exp %23 : vector<64x64xf32>
    %cst_18 = arith.constant dense<0.000000e+00> : vector<64xf32>
    %25 = vector.multi_reduction <add>, %24, %cst_18 [1] : vector<64x64xf32> to vector<64xf32>
    %26 = vector.shape_cast %25 : vector<64xf32> to vector<64x1xf32>
    %27 = tpu.reciprocal %26 {approx = true} : vector<64x1xf32> -> vector<64x1xf32>
    %28 = vector.broadcast %27 : vector<64x1xf32> to vector<64x64xf32>
    %29 = arith.mulf %24, %28 : vector<64x64xf32>
    %cst_19 = arith.constant dense<0.000000e+00> : vector<8x64xf32>
    %30 = tpu.matmul %16, %29, %cst_19 {dimension_numbers = #tpu.dot_dimension_numbers<[1], [0], [0], [1], [0, 0, 1, 1], [], []>} : vector<8x64xf32>, vector<64x64xf32>, vector<8x64xf32> -> vector<8x64xf32>
    %31 = arith.truncf %30 : vector<8x64xf32> to vector<8x64xbf16>
    %c0_20 = arith.constant 0 : index
    %c0_21 = arith.constant 0 : index
    %32 = vector.load %arg8[%c0_20, %c0_21] : memref<64x32xbf16, #tpu.memory_space<vmem>>, vector<64x32xbf16>
    %cst_22 = arith.constant dense<0.000000e+00> : vector<8x32xf32>
    %33 = tpu.matmul %31, %32, %cst_22 {dimension_numbers = #tpu.dot_dimension_numbers<[1], [0], [0], [1], [0, 0, 1, 1], [], []>} : vector<8x64xbf16>, vector<64x32xbf16>, vector<8x32xf32> -> vector<8x32xf32>
    %c0_23 = arith.constant 0 : index
    %c0_24 = arith.constant 0 : index
    %34 = vector.load %arg9[%c0_23, %c0_24] : memref<1x32xf32, #tpu.memory_space<vmem>>, vector<1x32xf32>
    %35 = vector.broadcast %34 : vector<1x32xf32> to vector<8x32xf32>
    %36 = arith.addf %33, %35 : vector<8x32xf32>
    %37 = arith.addf %36, %1 : vector<8x32xf32>
    %cst_25 = arith.constant dense<0.000000e+00> : vector<8xf32>
    %38 = vector.multi_reduction <add>, %37, %cst_25 [1] : vector<8x32xf32> to vector<8xf32>
    %39 = vector.shape_cast %38 : vector<8xf32> to vector<8x1xf32>
    %cst_26 = arith.constant 3.200000e+01 : f32
    %40 = vector.broadcast %cst_26 : f32 to vector<8x1xf32>
    %41 = arith.divf %39, %40 : vector<8x1xf32>
    %42 = vector.broadcast %41 : vector<8x1xf32> to vector<8x32xf32>
    %43 = arith.subf %37, %42 : vector<8x32xf32>
    %44 = arith.mulf %43, %43 : vector<8x32xf32>
    %cst_27 = arith.constant dense<0.000000e+00> : vector<8xf32>
    %45 = vector.multi_reduction <add>, %44, %cst_27 [1] : vector<8x32xf32> to vector<8xf32>
    %46 = vector.shape_cast %45 : vector<8xf32> to vector<8x1xf32>
    %cst_28 = arith.constant 3.200000e+01 : f32
    %47 = vector.broadcast %cst_28 : f32 to vector<8x1xf32>
    %48 = arith.divf %46, %47 : vector<8x1xf32>
    %cst_29 = arith.constant 9.99999997E-7 : f32
    %49 = vector.broadcast %cst_29 : f32 to vector<8x1xf32>
    %50 = arith.addf %48, %49 : vector<8x1xf32>
    %51 = math.rsqrt %50 : vector<8x1xf32>
    %52 = vector.broadcast %51 : vector<8x1xf32> to vector<8x32xf32>
    %53 = arith.mulf %43, %52 : vector<8x32xf32>
    %c0_30 = arith.constant 0 : index
    %c0_31 = arith.constant 0 : index
    %54 = vector.load %arg10[%c0_30, %c0_31] : memref<1x32xf32, #tpu.memory_space<vmem>>, vector<1x32xf32>
    %55 = vector.broadcast %54 : vector<1x32xf32> to vector<8x32xf32>
    %56 = arith.mulf %53, %55 : vector<8x32xf32>
    %c0_32 = arith.constant 0 : index
    %c0_33 = arith.constant 0 : index
    %57 = vector.load %arg11[%c0_32, %c0_33] : memref<1x32xf32, #tpu.memory_space<vmem>>, vector<1x32xf32>
    %58 = vector.broadcast %57 : vector<1x32xf32> to vector<8x32xf32>
    %59 = arith.addf %56, %58 : vector<8x32xf32>
    %c0_34 = arith.constant 0 : index
    %c0_35 = arith.constant 0 : index
    %60 = vector.load %arg12[%c0_34, %c0_35] : memref<8x32xf32, #tpu.memory_space<vmem>>, vector<8x32xf32>
    tpu.vector_store %arg12[%c0_34, %c0_35], %59 {strides = array<i32>} : memref<8x32xf32, #tpu.memory_space<vmem>>, vector<8x32xf32>,
    return
  }
  func.func @transform_0(%arg0: i32) -> (i32, i32) {
    %c0_i32 = arith.constant 0 : i32
    %c0_i32_0 = arith.constant 0 : i32
    return %arg0, %c0_i32 : i32, i32
  }
  func.func @transform_1(%arg0: i32) -> (i32, i32) {
    %c0_i32 = arith.constant 0 : i32
    %c0_i32_0 = arith.constant 0 : i32
    %c0_i32_1 = arith.constant 0 : i32
    return %c0_i32, %c0_i32_0 : i32, i32
  }
  func.func @transform_2(%arg0: i32) -> (i32, i32) {
    %c0_i32 = arith.constant 0 : i32
    %c0_i32_0 = arith.constant 0 : i32
    %c0_i32_1 = arith.constant 0 : i32
    return %c0_i32, %c0_i32_0 : i32, i32
  }
  func.func @transform_3(%arg0: i32) -> (i32, i32) {
    %c0_i32 = arith.constant 0 : i32
    %c0_i32_0 = arith.constant 0 : i32
    %c0_i32_1 = arith.constant 0 : i32
    return %c0_i32, %c0_i32_0 : i32, i32
  }
  func.func @transform_4(%arg0: i32) -> (i32, i32) {
    %c0_i32 = arith.constant 0 : i32
    %c0_i32_0 = arith.constant 0 : i32
    %c0_i32_1 = arith.constant 0 : i32
    return %c0_i32, %c0_i32_0 : i32, i32
  }
  func.func @transform_5(%arg0: i32) -> (i32, i32) {
    %c0_i32 = arith.constant 0 : i32
    %c0_i32_0 = arith.constant 0 : i32
    %c0_i32_1 = arith.constant 0 : i32
    return %c0_i32, %c0_i32_0 : i32, i32
  }
  func.func @transform_6(%arg0: i32) -> (i32, i32) {
    %c0_i32 = arith.constant 0 : i32
    %c0_i32_0 = arith.constant 0 : i32
    %c0_i32_1 = arith.constant 0 : i32
    return %c0_i32, %c0_i32_0 : i32, i32
  }
  func.func @transform_7(%arg0: i32) -> (i32, i32) {
    %c0_i32 = arith.constant 0 : i32
    %c0_i32_0 = arith.constant 0 : i32
    %c0_i32_1 = arith.constant 0 : i32
    return %c0_i32, %c0_i32_0 : i32, i32
  }
  func.func @transform_8(%arg0: i32) -> (i32, i32) {
    %c0_i32 = arith.constant 0 : i32
    %c0_i32_0 = arith.constant 0 : i32
    %c0_i32_1 = arith.constant 0 : i32
    return %c0_i32, %c0_i32_0 : i32, i32
  }
  func.func @transform_9(%arg0: i32) -> (i32, i32) {
    %c0_i32 = arith.constant 0 : i32
    %c0_i32_0 = arith.constant 0 : i32
    %c0_i32_1 = arith.constant 0 : i32
    return %c0_i32, %c0_i32_0 : i32, i32
  }
  func.func @transform_10(%arg0: i32) -> (i32, i32) {
    %c0_i32 = arith.constant 0 : i32
    %c0_i32_0 = arith.constant 0 : i32
    %c0_i32_1 = arith.constant 0 : i32
    return %c0_i32, %c0_i32_0 : i32, i32
  }
  func.func @transform_11(%arg0: i32) -> (i32, i32) {
    %c0_i32 = arith.constant 0 : i32
    %c0_i32_0 = arith.constant 0 : i32
    return %arg0, %c0_i32 : i32, i32
  }
}

</mosaic_0001>

<llo_original>
// kernel: tpu_custom_call.1
$region0: #{tpu_custom_call.1}
  #allocation0 [shape = 'u32[]', space=smem, size = 0x4, offset = 0x4, fixed_abs, tag = 'smem constant byte address 0x4 - core index']
  #allocation1 [shape = 'u32[72,128]{1,0:T(1,128)}', space=vmem, size = 0x9000, scoped, tag = 'internal scratch']
  %s0 = inlined_call_operand.hbm [shape: bf16[16,32], index: 0, kind: input, shape index: {}]
  %s1 = inlined_call_operand.vmem [shape: bf16[32,64], index: 1, kind: input, shape index: {}]
  %s2 = inlined_call_operand.vmem [shape: bf16[32,64], index: 2, kind: input, shape index: {}]
  %s3 = inlined_call_operand.vmem [shape: bf16[32,64], index: 3, kind: input, shape index: {}]
  %s4 = inlined_call_operand.vmem [shape: f32[1,64], index: 4, kind: input, shape index: {}]
  %s5 = inlined_call_operand.vmem [shape: f32[1,64], index: 5, kind: input, shape index: {}]
  %s6 = inlined_call_operand.vmem [shape: f32[1,64], index: 6, kind: input, shape index: {}]
  %s7 = inlined_call_operand.vmem [shape: bf16[64,32], index: 7, kind: input, shape index: {}]
  %s8 = inlined_call_operand.vmem [shape: f32[1,32], index: 8, kind: input, shape index: {}]
  %s9 = inlined_call_operand.vmem [shape: f32[1,32], index: 9, kind: input, shape index: {}]
  %s10 = inlined_call_operand.vmem [shape: f32[1,32], index: 10, kind: input, shape index: {}]
  %s11 = inlined_call_operand.hbm [shape: f32[16,32], index: 11, kind: output, shape index: {}]
  %s12 = sld [smem:[#allocation0]]
  $region81: #{tpu_custom_call.1} parent=0
    _
  %s14 = ssub.s32 1, %s12
  %s15 = scalar_select 0, %s14, %s12
  $region1: #{tpu_custom_call.1} parent=0
    #allocation2 [shape = 'u8[4096]{0}', space=vmem, size = 0x1000, scoped, tag = 'input window, operand 0']
    #allocation3 [shape = 's32[2]{0}', space=sflag, size = 0x8, scoped, tag = 'scoped memory for tpu_custom_call.1']
    #allocation4 [shape = 's32[2]{0}', space=sflag, size = 0x8, scoped, tag = 'scoped memory for tpu_custom_call.1']
    #allocation5 [shape = 'u8[8192]{0}', space=vmem, size = 0x2000, scoped, tag = 'output window, operand 0']
    %16 = vsyncpa [#allocation3], 0
    %s17 = scalar_lea.sflag [#allocation3], 1
    %18 = vsyncpa %s17, 0
    %19 = vsyncpa [#allocation4], 0
    %s20 = scalar_lea.sflag [#allocation4], 1
    %21 = vsyncpa %s20, 0
    loop: start=0, step=1, limit=4
    $region2: #{tpu_custom_call.1} parent=1 // loop_pre_header
      _
    $region3: #{tpu_custom_call.1} parent=1 // loop_header
      %s23 = sphi 0, %s27
      %p24 = scmp.ge.s32.totalorder %s23, 4
      %s33 = sphi 0, %s35
      %s36 = sphi 0, %s33
      %s37 = sphi 0, %s36
      %s53 = sphi 0, %s37
      %s57 = sphi 0, %s57
      %s59 = sphi 0, %s57
      %s60 = sphi 0, %s59
      %s74 = sphi 0, %s60
      %s78 = sphi 0, %s78
      %s80 = sphi 0, %s78
      %s81 = sphi 0, %s80
      %s95 = sphi 0, %s81
      %s99 = sphi 0, %s99
      %s101 = sphi 0, %s99
      %s102 = sphi 0, %s101
      %s116 = sphi 0, %s102
      %s120 = sphi 0, %s120
      %s122 = sphi 0, %s120
      %s123 = sphi 0, %s122
      %s137 = sphi 0, %s123
      %s141 = sphi 0, %s141
      %s143 = sphi 0, %s141
      %s144 = sphi 0, %s143
      %s158 = sphi 0, %s144
      %s162 = sphi 0, %s162
      %s164 = sphi 0, %s162
      %s165 = sphi 0, %s164
      %s179 = sphi 0, %s165
      %s183 = sphi 0, %s183
      %s185 = sphi 0, %s183
      %s186 = sphi 0, %s185
      %s200 = sphi 0, %s186
      %s204 = sphi 0, %s204
      %s206 = sphi 0, %s204
      %s207 = sphi 0, %s206
      %s221 = sphi 0, %s207
      %s225 = sphi 0, %s225
      %s227 = sphi 0, %s225
      %s228 = sphi 0, %s227
      %s242 = sphi 0, %s228
      %s246 = sphi 0, %s246
      %s248 = sphi 0, %s246
      %s249 = sphi 0, %s248
      %s263 = sphi 0, %s249
      %s269 = sphi 0, %s271
      %s272 = sphi 0, %s269
      %s273 = sphi 0, %s272
      %s289 = sphi 0, %s273
    $region4: #{tpu_custom_call.1} parent=1 // loop_header_branch
      %26 = sbr.rel (%p24) target = $region8
    $region5: #{tpu_custom_call.1} parent=1 // loop_body
      %s28 = ssub.s32 %s23, 1
      %s29 = ssub.s32 %s23, 2
      %s30 = sadd.s32 %s23, 1
      %s31 = ssub.s32 %s23, %s30
      %p32 = scmp.eq.s32.totalorder %s31, 0
      %s34 = sadd.s32 %s33, 1
      %s35 = scalar_select %p32, %s33, %s34
      %p38 = pneg %p32
      %p39 = scmp.eq.s32.totalorder %s23, 1
      %p40 = por %p38, %p39
      %p41 = scmp.ne.s32.totalorder %s33, %s36
      %p42 = scmp.eq.s32.totalorder %s23, 0
      %p43 = por %p41, %p42
      %p44 = scmp.ne.s32.totalorder %s33, %s36
      %p45 = scmp.eq.s32.totalorder %s28, 1
      %p46 = por %p44, %p45
      %p47 = scmp.ne.s32.totalorder %s36, %s37
      %p48 = scmp.eq.s32.totalorder %s28, 0
      %p49 = por %p47, %p48
      %p50 = scmp.ne.s32.totalorder %s36, %s37
      %p51 = scmp.eq.s32.totalorder %s29, 1
      %p52 = por %p50, %p51
      %p54 = scmp.ne.s32.totalorder %s37, %s53
      %p55 = scmp.eq.s32.totalorder %s29, 0
      %p56 = por %p54, %p55
      %s58 = sadd.s32 %s57, 1
      %p61 = scmp.eq.s32.totalorder %s23, 1
      %p62 = scmp.ne.s32.totalorder %s57, %s59
      %p63 = scmp.eq.s32.totalorder %s23, 0
      %p64 = por %p62, %p63
      %p65 = scmp.ne.s32.totalorder %s57, %s59
      %p66 = scmp.eq.s32.totalorder %s28, 1
      %p67 = por %p65, %p66
      %p68 = scmp.ne.s32.totalorder %s59, %s60
      %p69 = scmp.eq.s32.totalorder %s28, 0
      %p70 = por %p68, %p69
      %p71 = scmp.ne.s32.totalorder %s59, %s60
      %p72 = scmp.eq.s32.totalorder %s29, 1
      %p73 = por %p71, %p72
      %p75 = scmp.ne.s32.totalorder %s60, %s74
      %p76 = scmp.eq.s32.totalorder %s29, 0
      %p77 = por %p75, %p76
      %s79 = sadd.s32 %s78, 1
      %p82 = scmp.eq.s32.totalorder %s23, 1
      %p83 = scmp.ne.s32.totalorder %s78, %s80
      %p84 = scmp.eq.s32.totalorder %s23, 0
      %p85 = por %p83, %p84
      %p86 = scmp.ne.s32.totalorder %s78, %s80
      %p87 = scmp.eq.s32.totalorder %s28, 1
      %p88 = por %p86, %p87
      %p89 = scmp.ne.s32.totalorder %s80, %s81
      %p90 = scmp.eq.s32.totalorder %s28, 0
      %p91 = por %p89, %p90
      %p92 = scmp.ne.s32.totalorder %s80, %s81
      %p93 = scmp.eq.s32.totalorder %s29, 1
      %p94 = por %p92, %p93
      %p96 = scmp.ne.s32.totalorder %s81, %s95
      %p97 = scmp.eq.s32.totalorder %s29, 0
      %p98 = por %p96, %p97
      %s100 = sadd.s32 %s99, 1
      %p103 = scmp.eq.s32.totalorder %s23, 1
      %p104 = scmp.ne.s32.totalorder %s99, %s101
      %p105 = scmp.eq.s32.totalorder %s23, 0
      %p106 = por %p104, %p105
      %p107 = scmp.ne.s32.totalorder %s99, %s101
      %p108 = scmp.eq.s32.totalorder %s28, 1
      %p109 = por %p107, %p108
      %p110 = scmp.ne.s32.totalorder %s101, %s102
      %p111 = scmp.eq.s32.totalorder %s28, 0
      %p112 = por %p110, %p111
      %p113 = scmp.ne.s32.totalorder %s101, %s102
      %p114 = scmp.eq.s32.totalorder %s29, 1
      %p115 = por %p113, %p114
      %p117 = scmp.ne.s32.totalorder %s102, %s116
      %p118 = scmp.eq.s32.totalorder %s29, 0
      %p119 = por %p117, %p118
      %s121 = sadd.s32 %s120, 1
      %p124 = scmp.eq.s32.totalorder %s23, 1
      %p125 = scmp.ne.s32.totalorder %s120, %s122
      %p126 = scmp.eq.s32.totalorder %s23, 0
      %p127 = por %p125, %p126
      %p128 = scmp.ne.s32.totalorder %s120, %s122
      %p129 = scmp.eq.s32.totalorder %s28, 1
      %p130 = por %p128, %p129
      %p131 = scmp.ne.s32.totalorder %s122, %s123
      %p132 = scmp.eq.s32.totalorder %s28, 0
      %p133 = por %p131, %p132
      %p134 = scmp.ne.s32.totalorder %s122, %s123
      %p135 = scmp.eq.s32.totalorder %s29, 1
      %p136 = por %p134, %p135
      %p138 = scmp.ne.s32.totalorder %s123, %s137
      %p139 = scmp.eq.s32.totalorder %s29, 0
      %p140 = por %p138, %p139
      %s142 = sadd.s32 %s141, 1
      %p145 = scmp.eq.s32.totalorder %s23, 1
      %p146 = scmp.ne.s32.totalorder %s141, %s143
      %p147 = scmp.eq.s32.totalorder %s23, 0
      %p148 = por %p146, %p147
      %p149 = scmp.ne.s32.totalorder %s141, %s143
      %p150 = scmp.eq.s32.totalorder %s28, 1
      %p151 = por %p149, %p150
      %p152 = scmp.ne.s32.totalorder %s143, %s144
      %p153 = scmp.eq.s32.totalorder %s28, 0
      %p154 = por %p152, %p153
      %p155 = scmp.ne.s32.totalorder %s143, %s144
      %p156 = scmp.eq.s32.totalorder %s29, 1
      %p157 = por %p155, %p156
      %p159 = scmp.ne.s32.totalorder %s144, %s158
      %p160 = scmp.eq.s32.totalorder %s29, 0
      %p161 = por %p159, %p160
      %s163 = sadd.s32 %s162, 1
      %p166 = scmp.eq.s32.totalorder %s23, 1
      %p167 = scmp.ne.s32.totalorder %s162, %s164
      %p168 = scmp.eq.s32.totalorder %s23, 0
      %p169 = por %p167, %p168
      %p170 = scmp.ne.s32.totalorder %s162, %s164
      %p171 = scmp.eq.s32.totalorder %s28, 1
      %p172 = por %p170, %p171
      %p173 = scmp.ne.s32.totalorder %s164, %s165
      %p174 = scmp.eq.s32.totalorder %s28, 0
      %p175 = por %p173, %p174
      %p176 = scmp.ne.s32.totalorder %s164, %s165
      %p177 = scmp.eq.s32.totalorder %s29, 1
      %p178 = por %p176, %p177
      %p180 = scmp.ne.s32.totalorder %s165, %s179
      %p181 = scmp.eq.s32.totalorder %s29, 0
      %p182 = por %p180, %p181
      %s184 = sadd.s32 %s183, 1
      %p187 = scmp.eq.s32.totalorder %s23, 1
      %p188 = scmp.ne.s32.totalorder %s183, %s185
      %p189 = scmp.eq.s32.totalorder %s23, 0
      %p190 = por %p188, %p189
      %p191 = scmp.ne.s32.totalorder %s183, %s185
      %p192 = scmp.eq.s32.totalorder %s28, 1
      %p193 = por %p191, %p192
      %p194 = scmp.ne.s32.totalorder %s185, %s186
      %p195 = scmp.eq.s32.totalorder %s28, 0
      %p196 = por %p194, %p195
      %p197 = scmp.ne.s32.totalorder %s185, %s186
      %p198 = scmp.eq.s32.totalorder %s29, 1
      %p199 = por %p197, %p198
      %p201 = scmp.ne.s32.totalorder %s186, %s200
      %p202 = scmp.eq.s32.totalorder %s29, 0
      %p203 = por %p201, %p202
      %s205 = sadd.s32 %s204, 1
      %p208 = scmp.eq.s32.totalorder %s23, 1
      %p209 = scmp.ne.s32.totalorder %s204, %s206
      %p210 = scmp.eq.s32.totalorder %s23, 0
      %p211 = por %p209, %p210
      %p212 = scmp.ne.s32.totalorder %s204, %s206
      %p213 = scmp.eq.s32.totalorder %s28, 1
      %p214 = por %p212, %p213
      %p215 = scmp.ne.s32.totalorder %s206, %s207
      %p216 = scmp.eq.s32.totalorder %s28, 0
      %p217 = por %p215, %p216
      %p218 = scmp.ne.s32.totalorder %s206, %s207
      %p219 = scmp.eq.s32.totalorder %s29, 1
      %p220 = por %p218, %p219
      %p222 = scmp.ne.s32.totalorder %s207, %s221
      %p223 = scmp.eq.s32.totalorder %s29, 0
      %p224 = por %p222, %p223
      %s226 = sadd.s32 %s225, 1
      %p229 = scmp.eq.s32.totalorder %s23, 1
      %p230 = scmp.ne.s32.totalorder %s225, %s227
      %p231 = scmp.eq.s32.totalorder %s23, 0
      %p232 = por %p230, %p231
      %p233 = scmp.ne.s32.totalorder %s225, %s227
      %p234 = scmp.eq.s32.totalorder %s28, 1
      %p235 = por %p233, %p234
      %p236 = scmp.ne.s32.totalorder %s227, %s228
      %p237 = scmp.eq.s32.totalorder %s28, 0
      %p238 = por %p236, %p237
      %p239 = scmp.ne.s32.totalorder %s227, %s228
      %p240 = scmp.eq.s32.totalorder %s29, 1
      %p241 = por %p239, %p240
      %p243 = scmp.ne.s32.totalorder %s228, %s242
      %p244 = scmp.eq.s32.totalorder %s29, 0
      %p245 = por %p243, %p244
      %s247 = sadd.s32 %s246, 1
      %p250 = scmp.eq.s32.totalorder %s23, 1
      %p251 = scmp.ne.s32.totalorder %s246, %s248
      %p252 = scmp.eq.s32.totalorder %s23, 0
      %p253 = por %p251, %p252
      %p254 = scmp.ne.s32.totalorder %s246, %s248
      %p255 = scmp.eq.s32.totalorder %s28, 1
      %p256 = por %p254, %p255
      %p257 = scmp.ne.s32.totalorder %s248, %s249
      %p258 = scmp.eq.s32.totalorder %s28, 0
      %p259 = por %p257, %p258
      %p260 = scmp.ne.s32.totalorder %s248, %s249
      %p261 = scmp.eq.s32.totalorder %s29, 1
      %p262 = por %p260, %p261
      %p264 = scmp.ne.s32.totalorder %s249, %s263
      %p265 = scmp.eq.s32.totalorder %s29, 0
      %p266 = por %p264, %p265
      %s267 = ssub.s32 %s23, %s30
      %p268 = scmp.eq.s32.totalorder %s267, 0
      %s270 = sadd.s32 %s269, 1
      %s271 = scalar_select %p268, %s269, %s270
      %p274 = pneg %p268
      %p275 = scmp.eq.s32.totalorder %s23, 1
      %p276 = por %p274, %p275
      %p277 = scmp.ne.s32.totalorder %s269, %s272
      %p278 = scmp.eq.s32.totalorder %s23, 0
      %p279 = por %p277, %p278
      %p280 = scmp.ne.s32.totalorder %s269, %s272
      %p281 = scmp.eq.s32.totalorder %s28, 1
      %p282 = por %p280, %p281
      %p283 = scmp.ne.s32.totalorder %s272, %s273
      %p284 = scmp.eq.s32.totalorder %s28, 0
      %p285 = por %p283, %p284
      %p286 = scmp.ne.s32.totalorder %s272, %s273
      %p287 = scmp.eq.s32.totalorder %s29, 1
      %p288 = por %p286, %p287
      %p290 = scmp.ne.s32.totalorder %s273, %s289
      %p291 = scmp.eq.s32.totalorder %s29, 0
      %p292 = por %p290, %p291
      %p293 = scmp.le.s32.totalorder 1, %s23
      %p294 = scmp.lt.s32.totalorder %s23, 3
      %p295 = pnand %p293, %p294
      %p296 = pneg %p295
      // Predicated region
      $region9: #{tpu_custom_call.1} parent=5 // pred_check
        _
      $region10: #{tpu_custom_call.1} parent=5 // pred_check_branch
        %298 = sbr.rel (%p295) target = $region12
      $region11: #{tpu_custom_call.1} parent=5 // pred_region
        %s299 = ssub.s32 %s23, 1
        // Predicated region
        $region13: #{tpu_custom_call.1} parent=11 // pred_check
          %p300 = pneg %p70
        $region14: #{tpu_custom_call.1} parent=11 // pred_check_branch
          %302 = sbr.rel (%p300) target = $region16
        $region15: #{tpu_custom_call.1} parent=11 // pred_region
          _
        $region16: #{tpu_custom_call.1} parent=11 // pred_fallthru
          _
        // Predicated region
        $region17: #{tpu_custom_call.1} parent=11 // pred_check
          %p303 = pneg %p91
        $region18: #{tpu_custom_call.1} parent=11 // pred_check_branch
          %305 = sbr.rel (%p303) target = $region20
        $region19: #{tpu_custom_call.1} parent=11 // pred_region
          _
        $region20: #{tpu_custom_call.1} parent=11 // pred_fallthru
          _
        // Predicated region
        $region21: #{tpu_custom_call.1} parent=11 // pred_check
          %p306 = pneg %p112
        $region22: #{tpu_custom_call.1} parent=11 // pred_check_branch
          %308 = sbr.rel (%p306) target = $region24
        $region23: #{tpu_custom_call.1} parent=11 // pred_region
          _
        $region24: #{tpu_custom_call.1} parent=11 // pred_fallthru
          _
        // Predicated region
        $region25: #{tpu_custom_call.1} parent=11 // pred_check
          %p309 = pneg %p133
        $region26: #{tpu_custom_call.1} parent=11 // pred_check_branch
          %311 = sbr.rel (%p309) target = $region28
        $region27: #{tpu_custom_call.1} parent=11 // pred_region
          _
        $region28: #{tpu_custom_call.1} parent=11 // pred_fallthru
          _
        // Predicated region
        $region29: #{tpu_custom_call.1} parent=11 // pred_check
          %p312 = pneg %p154
        $region30: #{tpu_custom_call.1} parent=11 // pred_check_branch
          %314 = sbr.rel (%p312) target = $region32
        $region31: #{tpu_custom_call.1} parent=11 // pred_region
          _
        $region32: #{tpu_custom_call.1} parent=11 // pred_fallthru
          _
        // Predicated region
        $region33: #{tpu_custom_call.1} parent=11 // pred_check
          %p315 = pneg %p175
        $region34: #{tpu_custom_call.1} parent=11 // pred_check_branch
          %317 = sbr.rel (%p315) target = $region36
        $region35: #{tpu_custom_call.1} parent=11 // pred_region
          _
        $region36: #{tpu_custom_call.1} parent=11 // pred_fallthru
          _
        // Predicated region
        $region37: #{tpu_custom_call.1} parent=11 // pred_check
          %p318 = pneg %p196
        $region38: #{tpu_custom_call.1} parent=11 // pred_check_branch
          %320 = sbr.rel (%p318) target = $region40
        $region39: #{tpu_custom_call.1} parent=11 // pred_region
          _
        $region40: #{tpu_custom_call.1} parent=11 // pred_fallthru
          _
        // Predicated region
        $region41: #{tpu_custom_call.1} parent=11 // pred_check
          %p321 = pneg %p217
        $region42: #{tpu_custom_call.1} parent=11 // pred_check_branch
          %323 = sbr.rel (%p321) target = $region44
        $region43: #{tpu_custom_call.1} parent=11 // pred_region
          _
        $region44: #{tpu_custom_call.1} parent=11 // pred_fallthru
          _
        // Predicated region
        $region45: #{tpu_custom_call.1} parent=11 // pred_check
          %p324 = pneg %p238
        $region46: #{tpu_custom_call.1} parent=11 // pred_check_branch
          %326 = sbr.rel (%p324) target = $region48
        $region47: #{tpu_custom_call.1} parent=11 // pred_region
          _
        $region48: #{tpu_custom_call.1} parent=11 // pred_fallthru
          _
        // Predicated region
        $region49: #{tpu_custom_call.1} parent=11 // pred_check
          %p327 = pneg %p259
        $region50: #{tpu_custom_call.1} parent=11 // pred_check_branch
          %329 = sbr.rel (%p327) target = $region52
        $region51: #{tpu_custom_call.1} parent=11 // pred_region
          _
        $region52: #{tpu_custom_call.1} parent=11 // pred_fallthru
          _
      $region12: #{tpu_custom_call.1} parent=5 // pred_fallthru
        _
      %p330 = scmp.lt.s32.totalorder %s23, 2
      // Predicated region
      $region53: #{tpu_custom_call.1} parent=5 // pred_check
        %p331 = pneg %p330
      $region54: #{tpu_custom_call.1} parent=5 // pred_check_branch
        %333 = sbr.rel (%p331) target = $region56
      $region55: #{tpu_custom_call.1} parent=5 // pred_region
        // Predicated region
        $region57: #{tpu_custom_call.1} parent=55 // pred_check
          %p334 = pneg %p43
        $region58: #{tpu_custom_call.1} parent=55 // pred_check_branch
          %336 = sbr.rel (%p334) target = $region60
        $region59: #{tpu_custom_call.1} parent=55 // pred_region
          %s337 = sand.u32 %s33, 1
          %s338 = scalar_lea.sflag [#allocation3], %s337
          %s339 = sand.u32 %s33, 1
          %s340 = smul.addr %s339, 4
          %s341 = scalar_lea.vmem [#allocation2], %s340
          %343 = vsyncadd %s338, 0
          %s344 = smul.addr %s23, 4
          %s345 = scalar_lea.hbm %s0, %s344
          %s347 = sshll.u32 %s345, 4
          %s348 = int_to_ptr.hbm [resolvable:$true] %s347
          %s349 = sshll.u32 %s341, 4
          %s350 = int_to_ptr.vmem [resolvable:$true] %s349
          %352 = dma.hbm_to_vmem [thread:$0]  %s348, 64, %s350, %s338
        $region60: #{tpu_custom_call.1} parent=55 // pred_fallthru
          _
      $region56: #{tpu_custom_call.1} parent=5 // pred_fallthru
        _
      %p353 = scmp.le.s32.totalorder 1, %s23
      %p354 = scmp.lt.s32.totalorder %s23, 3
      %p355 = pnand %p353, %p354
      %p356 = pneg %p355
      // Predicated region
      $region61: #{tpu_custom_call.1} parent=5 // pred_check
        _
      $region62: #{tpu_custom_call.1} parent=5 // pred_check_branch
        %358 = sbr.rel (%p355) target = $region64
      $region63: #{tpu_custom_call.1} parent=5 // pred_region
        %s359 = ssub.s32 %s23, 1
        %s360 = sand.u32 %s36, 1
        %s361 = scalar_lea.sflag [#allocation3], %s360
        %s362 = sand.u32 %s36, 1
        %s363 = smul.addr %s362, 4
        %s364 = scalar_lea.vmem [#allocation2], %s363
        // Predicated region
        $region65: #{tpu_custom_call.1} parent=63 // pred_check
          %p365 = pneg %p49
        $region66: #{tpu_custom_call.1} parent=63 // pred_check_branch
          %367 = sbr.rel (%p365) target = $region68
        $region67: #{tpu_custom_call.1} parent=63 // pred_region
          %369 = dma.done %s361, 64
        $region68: #{tpu_custom_call.1} parent=63 // pred_fallthru
          _
        %s370 = sand.u32 %s36, 1
        %s371 = scalar_lea.sflag [#allocation3], %s370
        %s372 = sand.u32 %s36, 1
        %s373 = smul.addr %s372, 4
        %s374 = scalar_lea.vmem [#allocation2], %s373
        %p375 = pneg %p49
        %p376 = pneg %p46
        %p377 = pneg %p70
        %p378 = pneg %p67
        %p379 = pneg %p91
        %p380 = pneg %p88
        %p381 = pneg %p112
        %p382 = pneg %p109
        %p383 = pneg %p133
        %p384 = pneg %p130
        %p385 = pneg %p154
        %p386 = pneg %p151
        %p387 = pneg %p175
        %p388 = pneg %p172
        %p389 = pneg %p196
        %p390 = pneg %p193
        %p391 = pneg %p217
        %p392 = pneg %p214
        %p393 = pneg %p238
        %p394 = pneg %p235
        %p395 = pneg %p259
        %p396 = pneg %p256
        %p397 = pneg %p285
        %p398 = pneg %p282
        %s399 = sand.u32 %s272, 1
        %s400 = scalar_lea.sflag [#allocation4], %s399
        %s401 = sand.u32 %s272, 1
        %s402 = smul.addr %s401, 8
        %s403 = scalar_lea.vmem [#allocation5], %s402
        %v405 = vld [vmem:[%s364] sm:$0xf]
        %v406 = vunpack.c.l.bf16 %v405
        %v407 = vld [vmem:[%s1] sm:$0xf]
        %v408 = vld [vmem:[%s1 + $0x4] sm:$0xf]
        %v409 = vld [vmem:[%s1 + $0x8] sm:$0xf]
        %v410 = vld [vmem:[%s1 + $0xc] sm:$0xf]
        %v411 = vld [vmem:[%s4] sm:$0x1]
        %v413 = vperm.slane %v411, 0
        %v419 = vunpack.c.l.b16 %v407
        %v420 = vunpack.c.l.b16 %v408
        %v421 = vunpack.c.l.b16 %v409
        %v422 = vunpack.c.l.b16 %v410
        %v423 = vpack.c.b16 %v420, %v419
        %v424 = vpack.c.b16 %v422, %v421
        %vm427 = vcmask 261120
        %v429 = vsel %vm427, %v405, 0
        %431 = vmatpush.bf16.msra.mxu0 0
        %432 = vmatpush.bf16.msra.mxu0 0
        %433 = vmatpush.bf16.msra.mxu0 0
        %434 = vmatpush.bf16.msra.mxu0 0
        %435 = vmatpush.bf16.msra.mxu0 0
        %436 = vmatpush.bf16.msra.mxu0 0
        %437 = vmatpush.bf16.msra.mxu0 %v424
        %438 = vmatpush.bf16.msra.mxu0 %v423
        %439 = vmatmul.bf16.gmra.mxu0 %v429
        %v440 = vpop.f32.mrf.mxu0
        %v441 = vadd.f32 %v413, %v440
        %v442 = vpop.f32.mrf.mxu0
        %443 = vdwg.mxu0
        %v444 = vld [vmem:[%s2] sm:$0xf]
        %v445 = vld [vmem:[%s2 + $0x4] sm:$0xf]
        %v446 = vld [vmem:[%s2 + $0x8] sm:$0xf]
        %v447 = vld [vmem:[%s2 + $0xc] sm:$0xf]
        %v448 = vld [vmem:[%s5] sm:$0x1]
        %v450 = vperm.slane %v448, 0
        %v456 = vunpack.c.l.b16 %v444
        %v457 = vunpack.c.l.b16 %v445
        %v458 = vunpack.c.l.b16 %v446
        %v459 = vunpack.c.l.b16 %v447
        %v460 = vpack.c.b16 %v457, %v456
        %v461 = vpack.c.b16 %v459, %v458
        %464 = vmatpush.bf16.msra.mxu0 0
        %465 = vmatpush.bf16.msra.mxu0 0
        %466 = vmatpush.bf16.msra.mxu0 0
        %467 = vmatpush.bf16.msra.mxu0 0
        %468 = vmatpush.bf16.msra.mxu0 0
        %469 = vmatpush.bf16.msra.mxu0 0
        %470 = vmatpush.bf16.msra.mxu0 %v461
        %471 = vmatpush.bf16.msra.mxu0 %v460
        %472 = vmatmul.bf16.gmra.mxu0 %v429
        %v473 = vpop.f32.mrf.mxu0
        %v474 = vadd.f32 %v450, %v473
        %v475 = vpop.f32.mrf.mxu0
        %476 = vdwg.mxu0
        %v477 = vld [vmem:[%s3] sm:$0xf]
        %v478 = vld [vmem:[%s3 + $0x4] sm:$0xf]
        %v479 = vld [vmem:[%s3 + $0x8] sm:$0xf]
        %v480 = vld [vmem:[%s3 + $0xc] sm:$0xf]
        %v481 = vld [vmem:[%s6] sm:$0x1]
        %v483 = vperm.slane %v481, 0
        %v489 = vunpack.c.l.b16 %v477
        %v490 = vunpack.c.l.b16 %v478
        %v491 = vunpack.c.l.b16 %v479
        %v492 = vunpack.c.l.b16 %v480
        %v493 = vpack.c.b16 %v490, %v489
        %v494 = vpack.c.b16 %v492, %v491
        %497 = vmatpush.bf16.msra.mxu0 0
        %498 = vmatpush.bf16.msra.mxu0 0
        %499 = vmatpush.bf16.msra.mxu0 0
        %500 = vmatpush.bf16.msra.mxu0 0
        %501 = vmatpush.bf16.msra.mxu0 0
        %502 = vmatpush.bf16.msra.mxu0 0
        %503 = vmatpush.bf16.msra.mxu0 %v494
        %504 = vmatpush.bf16.msra.mxu0 %v493
        %505 = vmatmul.bf16.gmra.mxu0 %v429
        %v506 = vpop.f32.mrf.mxu0
        %v507 = vadd.f32 %v483, %v506
        %v508 = vpop.f32.mrf.mxu0
        %509 = vdwg.mxu0
        %510 = vxpose.xlu0.b32.start [1/16] %v441, 128
        %511 = vxpose.xlu0.b32.cont [2/16] 0.0, 128
        %512 = vxpose.xlu0.b32.cont [3/16] 0.0, 128
        %513 = vxpose.xlu0.b32.cont [4/16] 0.0, 128
        %514 = vxpose.xlu0.b32.cont [5/16] 0.0, 128
        %515 = vxpose.xlu0.b32.cont [6/16] 0.0, 128
        %516 = vxpose.xlu0.b32.cont [7/16] 0.0, 128
        %517 = vxpose.xlu0.b32.cont [8/16] 0.0, 128
        %518 = vxpose.xlu0.b32.cont [9/16] 0.0, 128
        %519 = vxpose.xlu0.b32.cont [10/16] 0.0, 128
        %520 = vxpose.xlu0.b32.cont [11/16] 0.0, 128
        %521 = vxpose.xlu0.b32.cont [12/16] 0.0, 128
        %522 = vxpose.xlu0.b32.cont [13/16] 0.0, 128
        %523 = vxpose.xlu0.b32.cont [14/16] 0.0, 128
        %524 = vxpose.xlu0.b32.cont [15/16] 0.0, 128
        %525 = vxpose.xlu0.b32.end [16/16] 0.0, 128
        %v526 = vpop.trf.xlu0
        %v527 = vpop.trf.xlu0
        %v528 = vpop.trf.xlu0
        %v529 = vpop.trf.xlu0
        %v530 = vpop.trf.xlu0
        %v531 = vpop.trf.xlu0
        %v532 = vpop.trf.xlu0
        %v533 = vpop.trf.xlu0
        %v534 = vpop.trf.xlu0
        %v535 = vpop.trf.xlu0
        %v536 = vpop.trf.xlu0
        %v537 = vpop.trf.xlu0
        %v538 = vpop.trf.xlu0
        %v539 = vpop.trf.xlu0
        %v540 = vpop.trf.xlu0
        %v541 = vpop.trf.xlu0
        %vm542 = vcmask 64512
        %v544 = vsel %vm542, %v526, 0
        %v547 = vsel %vm542, %v527, 0
        %v550 = vsel %vm542, %v528, 0
        %v553 = vsel %vm542, %v529, 0
        %v556 = vsel %vm542, %v530, 0
        %v559 = vsel %vm542, %v531, 0
        %v562 = vsel %vm542, %v532, 0
        %v565 = vsel %vm542, %v533, 0
        %567 = vmatpush.msra.mxu0 0.0
        %568 = vmatpush.msra.mxu0 0.0
        %569 = vmatpush.msra.mxu0 0.0
        %570 = vmatpush.msra.mxu0 0.0
        %571 = vmatpush.msra.mxu0 0.0
        %572 = vmatpush.msra.mxu0 0.0
        %573 = vmatpush.msra.mxu0 0.0
        %574 = vmatpush.msra.mxu0 0.0
        %575 = vmatpush.msra.mxu0 0.0
        %576 = vmatpush.msra.mxu0 0.0
        %577 = vmatpush.msra.mxu0 0.0
        %578 = vmatpush.msra.mxu0 0.0
        %579 = vmatpush.msra.mxu0 0.0
        %580 = vmatpush.msra.mxu0 0.0
        %581 = vmatpush.msra.mxu0 0.0
        %582 = vmatpush.msra.mxu0 %v474
        %583 = vmatmul.f32.gmra.mxu0 %v544
        %v584 = vpop.f32.mrf.mxu0
        %v585 = vadd.f32 0.0, %v584
        %586 = vmatmul.f32.gmra.mxu0 %v547
        %v587 = vpop.f32.mrf.mxu0
        %v588 = vadd.f32 0.0, %v587
        %589 = vmatmul.f32.gmra.mxu0 %v550
        %v590 = vpop.f32.mrf.mxu0
        %v591 = vadd.f32 0.0, %v590
        %592 = vmatmul.f32.gmra.mxu0 %v553
        %v593 = vpop.f32.mrf.mxu0
        %v594 = vadd.f32 0.0, %v593
        %595 = vmatmul.f32.gmra.mxu0 %v556
        %v596 = vpop.f32.mrf.mxu0
        %v597 = vadd.f32 0.0, %v596
        %598 = vmatmul.f32.gmra.mxu0 %v559
        %v599 = vpop.f32.mrf.mxu0
        %v600 = vadd.f32 0.0, %v599
        %601 = vmatmul.f32.gmra.mxu0 %v562
        %v602 = vpop.f32.mrf.mxu0
        %v603 = vadd.f32 0.0, %v602
        %604 = vmatmul.f32.gmra.mxu0 %v565
        %v605 = vpop.f32.mrf.mxu0
        %v606 = vadd.f32 0.0, %v605
        %607 = vdwg.mxu0
        %v608 = vmul.f32 %v585, 0.125
        %v609 = vmul.f32 %v588, 0.125
        %v610 = vmul.f32 %v591, 0.125
        %v611 = vmul.f32 %v594, 0.125
        %v612 = vmul.f32 %v597, 0.125
        %v613 = vmul.f32 %v600, 0.125
        %v614 = vmul.f32 %v603, 0.125
        %v615 = vmul.f32 %v606, 0.125
        %vm616 = vcmask 523264
        %v617 = vsel %vm616, %v608, -inf
        %618 = vmax.xlane.f32.xlu0 %v617
        %v619 = vpop.xlane.xlu0 %618
        %v620 = vsel %vm616, %v609, -inf
        %621 = vmax.xlane.f32.xlu0 %v620
        %v622 = vpop.xlane.xlu0 %621
        %v623 = vsel %vm616, %v610, -inf
        %624 = vmax.xlane.f32.xlu0 %v623
        %v625 = vpop.xlane.xlu0 %624
        %v626 = vsel %vm616, %v611, -inf
        %627 = vmax.xlane.f32.xlu0 %v626
        %v628 = vpop.xlane.xlu0 %627
        %v629 = vsel %vm616, %v612, -inf
        %630 = vmax.xlane.f32.xlu0 %v629
        %v631 = vpop.xlane.xlu0 %630
        %v632 = vsel %vm616, %v613, -inf
        %633 = vmax.xlane.f32.xlu0 %v632
        %v634 = vpop.xlane.xlu0 %633
        %v635 = vsel %vm616, %v614, -inf
        %636 = vmax.xlane.f32.xlu0 %v635
        %v637 = vpop.xlane.xlu0 %636
        %v638 = vsel %vm616, %v615, -inf
        %639 = vmax.xlane.f32.xlu0 %v638
        %v640 = vpop.xlane.xlu0 %639
        %v641 = vsub.f32 %v608, %v619
        %v642 = vsub.f32 %v609, %v622
        %v643 = vsub.f32 %v610, %v625
        %v644 = vsub.f32 %v611, %v628
        %v645 = vsub.f32 %v612, %v631
        %v646 = vsub.f32 %v613, %v634
        %v647 = vsub.f32 %v614, %v637
        %v648 = vsub.f32 %v615, %v640
        %v649 = vmul.f32 %v641, 1.442695
        %v650 = vpow.pop %v649
        %v651 = vmul.f32 %v642, 1.442695
        %v652 = vpow.pop %v651
        %v653 = vmul.f32 %v643, 1.442695
        %v654 = vpow.pop %v653
        %v655 = vmul.f32 %v644, 1.442695
        %v656 = vpow.pop %v655
        %v657 = vmul.f32 %v645, 1.442695
        %v658 = vpow.pop %v657
        %v659 = vmul.f32 %v646, 1.442695
        %v660 = vpow.pop %v659
        %v661 = vmul.f32 %v647, 1.442695
        %v662 = vpow.pop %v661
        %v663 = vmul.f32 %v648, 1.442695
        %v664 = vpow.pop %v663
        %v665 = vsel %vm616, %v650, 0.0
        %666 = vadd.xlane.f32.xlu0 %v665
        %v667 = vpop.xlane.xlu0 %666
        %v668 = vsel %vm616, %v652, 0.0
        %669 = vadd.xlane.f32.xlu0 %v668
        %v670 = vpop.xlane.xlu0 %669
        %v671 = vsel %vm616, %v654, 0.0
        %672 = vadd.xlane.f32.xlu0 %v671
        %v673 = vpop.xlane.xlu0 %672
        %v674 = vsel %vm616, %v656, 0.0
        %675 = vadd.xlane.f32.xlu0 %v674
        %v676 = vpop.xlane.xlu0 %675
        %v677 = vsel %vm616, %v658, 0.0
        %678 = vadd.xlane.f32.xlu0 %v677
        %v679 = vpop.xlane.xlu0 %678
        %v680 = vsel %vm616, %v660, 0.0
        %681 = vadd.xlane.f32.xlu0 %v680
        %v682 = vpop.xlane.xlu0 %681
        %v683 = vsel %vm616, %v662, 0.0
        %684 = vadd.xlane.f32.xlu0 %v683
        %v685 = vpop.xlane.xlu0 %684
        %v686 = vsel %vm616, %v664, 0.0
        %687 = vadd.xlane.f32.xlu0 %v686
        %v688 = vpop.xlane.xlu0 %687
        %v689 = vrcp.pop %v667
        %v690 = vrcp.pop %v670
        %v691 = vrcp.pop %v673
        %v692 = vrcp.pop %v676
        %v693 = vrcp.pop %v679
        %v694 = vrcp.pop %v682
        %v695 = vrcp.pop %v685
        %v696 = vrcp.pop %v688
        %v697 = vmul.f32 %v650, %v689
        %v698 = vmul.f32 %v652, %v690
        %v699 = vmul.f32 %v654, %v691
        %v700 = vmul.f32 %v656, %v692
        %v701 = vmul.f32 %v658, %v693
        %v702 = vmul.f32 %v660, %v694
        %v703 = vmul.f32 %v662, %v695
        %v704 = vmul.f32 %v664, %v696
        %v706 = vsel %vm616, %v507, 0
        %708 = vmatpush.msra.mxu0 0.0
        %709 = vmatpush.msra.mxu0 0.0
        %710 = vmatpush.msra.mxu0 0.0
        %711 = vmatpush.msra.mxu0 0.0
        %712 = vmatpush.msra.mxu0 0.0
        %713 = vmatpush.msra.mxu0 0.0
        %714 = vmatpush.msra.mxu0 0.0
        %715 = vmatpush.msra.mxu0 0.0
        %716 = vmatpush.msra.mxu0 %v704
        %717 = vmatpush.msra.mxu0 %v703
        %718 = vmatpush.msra.mxu0 %v702
        %719 = vmatpush.msra.mxu0 %v701
        %720 = vmatpush.msra.mxu0 %v700
        %721 = vmatpush.msra.mxu0 %v699
        %722 = vmatpush.msra.mxu0 %v698
        %723 = vmatpush.msra.mxu0 %v697
        %724 = vmatmul.f32.gmra.mxu0 %v706
        %v725 = vpop.f32.mrf.mxu0
        %v726 = vadd.f32 0.0, %v725
        %727 = vdwg.mxu0
        %v728 = vpack.c.bf16 %v726, %v726
        %v729 = vld [vmem:[%s7] sm:$0xf]
        %v730 = vld [vmem:[%s7 + $0x4] sm:$0xf]
        %v731 = vld [vmem:[%s7 + $0x8] sm:$0xf]
        %v732 = vld [vmem:[%s7 + $0xc] sm:$0xf]
        %v733 = vld [vmem:[%s7 + $0x10] sm:$0xf]
        %v734 = vld [vmem:[%s7 + $0x14] sm:$0xf]
        %v735 = vld [vmem:[%s7 + $0x18] sm:$0xf]
        %v736 = vld [vmem:[%s7 + $0x1c] sm:$0xf]
        %v737 = vld [vmem:[%s8] sm:$0x1]
        %v739 = vperm.slane %v737, 0
        %v749 = vunpack.c.l.b16 %v729
        %v750 = vunpack.c.l.b16 %v730
        %v751 = vunpack.c.l.b16 %v731
        %v752 = vunpack.c.l.b16 %v732
        %v753 = vunpack.c.l.b16 %v733
        %v754 = vunpack.c.l.b16 %v734
        %v755 = vunpack.c.l.b16 %v735
        %v756 = vunpack.c.l.b16 %v736
        %v757 = vpack.c.b16 %v750, %v749
        %v758 = vpack.c.b16 %v752, %v751
        %v759 = vpack.c.b16 %v754, %v753
        %v760 = vpack.c.b16 %v756, %v755
        %v766 = vsel %vm616, %v728, 0
        %768 = vmatpush.bf16.msra.mxu0 0
        %769 = vmatpush.bf16.msra.mxu0 0
        %770 = vmatpush.bf16.msra.mxu0 0
        %771 = vmatpush.bf16.msra.mxu0 0
        %772 = vmatpush.bf16.msra.mxu0 %v760
        %773 = vmatpush.bf16.msra.mxu0 %v759
        %774 = vmatpush.bf16.msra.mxu0 %v758
        %775 = vmatpush.bf16.msra.mxu0 %v757
        %776 = vmatmul.bf16.gmra.mxu0 %v766
        %v777 = vpop.f32.mrf.mxu0
        %v778 = vadd.f32 %v739, %v777
        %v779 = vpop.f32.mrf.mxu0
        %780 = vdwg.mxu0
        %v781 = vadd.f32 %v778, %v406
        %v782 = vsel %vm427, %v781, 0.0
        %783 = vadd.xlane.f32.xlu0 %v782
        %v784 = vpop.xlane.xlu0 %783
        %v785 = vrcp.pop 32.0
        %v786 = vmul.f32 32.0, %v785
        %v787 = vsub.f32 1.0, %v786
        %v788 = vmul.f32 %v785, %v787
        %v789 = vadd.f32 %v785, %v788
        %vm790 = vweird.f32 %v785
        %v791 = vsel %vm790, %v785, %v789
        %v792 = vmul.f32 %v784, %v791
        %v793 = vsub.f32 %v781, %v792
        %v794 = vmul.f32 %v793, %v793
        %v795 = vsel %vm427, %v794, 0.0
        %796 = vadd.xlane.f32.xlu0 %v795
        %v797 = vpop.xlane.xlu0 %796
        %v798 = vmul.f32 %v797, %v791
        %v799 = vadd.f32 %v798, 1e-06
        %v800 = vrsqrt.pop %v799
        %v801 = vmul.f32 %v800, %v799
        %v802 = vmul.f32 %v801, %v800
        %v803 = vmul.f32 0.5, %v802
        %v804 = vsub.f32 1.5, %v803
        %v805 = vmul.f32 %v800, %v804
        %vm806 = vweird.f32 %v799
        %vm807 = vweird.f32 %v800
        %vm808 = vmor %vm806, %vm807
        %v809 = vsel %vm808, %v800, %v805
        %v810 = vmul.f32 %v793, %v809
        %v811 = vld [vmem:[%s9] sm:$0x1]
        %v813 = vperm.slane %v811, 0
        %v815 = vmul.f32 %v810, %v813
        %v816 = vld [vmem:[%s10] sm:$0x1]
        %v818 = vperm.slane %v816, 0
        %v820 = vadd.f32 %v815, %v818
        %821 = vst.msk [vmem:[%s403] sm:$0xff] %vm427, %v820
        %s822 = sand.u32 %s272, 1
        %s823 = scalar_lea.sflag [#allocation4], %s822
        %s824 = sand.u32 %s272, 1
        %s825 = smul.addr %s824, 8
        %s826 = scalar_lea.vmem [#allocation5], %s825
        // Predicated region
        $region69: #{tpu_custom_call.1} parent=63 // pred_check
          %p827 = pneg %p282
        $region70: #{tpu_custom_call.1} parent=63 // pred_check_branch
          %829 = sbr.rel (%p827) target = $region72
        $region71: #{tpu_custom_call.1} parent=63 // pred_region
          %831 = vsyncadd %s823, 0
          %s832 = smul.addr %s28, 8
          %s833 = scalar_lea.hbm %s11, %s832
          %s835 = sshll.u32 %s826, 4
          %s836 = int_to_ptr.vmem [resolvable:$true] %s835
          %s837 = sshll.u32 %s833, 4
          %s838 = int_to_ptr.hbm [resolvable:$true] %s837
          %840 = dma.vmem_to_hbm [thread:$0]  %s836, 128, %s838, %s823
        $region72: #{tpu_custom_call.1} parent=63 // pred_fallthru
          _
      $region64: #{tpu_custom_call.1} parent=5 // pred_fallthru
        _
      %p841 = scmp.le.s32.totalorder 2, %s23
      // Predicated region
      $region73: #{tpu_custom_call.1} parent=5 // pred_check
        %p842 = pneg %p841
      $region74: #{tpu_custom_call.1} parent=5 // pred_check_branch
        %844 = sbr.rel (%p842) target = $region76
      $region75: #{tpu_custom_call.1} parent=5 // pred_region
        %s845 = ssub.s32 %s23, 2
        // Predicated region
        $region77: #{tpu_custom_call.1} parent=75 // pred_check
          %p846 = pneg %p288
        $region78: #{tpu_custom_call.1} parent=75 // pred_check_branch
          %848 = sbr.rel (%p846) target = $region80
        $region79: #{tpu_custom_call.1} parent=75 // pred_region
          %s849 = sand.u32 %s273, 1
          %s850 = scalar_lea.sflag [#allocation4], %s849
          %s851 = sand.u32 %s273, 1
          %s852 = smul.addr %s851, 8
          %s853 = scalar_lea.vmem [#allocation5], %s852
          %855 = dma.done %s850, 128
        $region80: #{tpu_custom_call.1} parent=75 // pred_fallthru
          _
      $region76: #{tpu_custom_call.1} parent=5 // pred_fallthru
        _
    $region6: #{tpu_custom_call.1} parent=1 // loop_footer
      %s27 = sadd.s32 1, %s23
    $region7: #{tpu_custom_call.1} parent=1 // loop_footer_branch
      %22 = sbr.rel target = $region3
    $region8: #{tpu_custom_call.1} parent=1 // loop_exit
      _
    %856 = vsyncpa [#allocation3], 1
    %s857 = scalar_lea.sflag [#allocation3], 1
    %858 = vsyncpa %s857, 1
    %859 = vsyncpa [#allocation4], 1
    %s860 = scalar_lea.sflag [#allocation4], 1
    %861 = vsyncpa %s860, 1

</llo_original>
